<compile_context>
chip_gen: v6e
topology: v6e:2x2x1
jax: 0.10.0
libtpu: 0.0.40
codegen_flags: <defaults>
</compile_context>

<pallas_src>
import functools

import jax
import jax.numpy as jnp
from jax import lax
from jax.experimental import pallas as pl
from jax.experimental.pallas import tpu as pltpu

LANE = 128


def _dice_sums_kernel(x_ref, t_ref, out_ref, *, softmax_norm, valid_pixels,
                      mask_needed):
    """Accumulate per-channel dice statistics for one (batch, pixel-tile) step.

    x_ref  : (C, rt, 128) float   logits tile
    t_ref  : (C, rt, 128) float   target tile (same shape as input, e.g. one-hot)
    out_ref: (C, 3)       float32 resident accumulator for this batch index:
             column 0 = sum(p*t), column 1 = sum(p*p), column 2 = sum(t*t)
    """
    r = pl.program_id(1)

    @pl.when(r == 0)
    def _():
        out_ref[...] = jnp.zeros_like(out_ref)

    x = x_ref[...].astype(jnp.float32)                    # (C, rt, 128)
    t = t_ref[...].astype(jnp.float32)

    if softmax_norm:
        # softmax over the channel (leading) axis — elementwise across vregs.
        m = jnp.max(x, axis=0, keepdims=True)
        e = jnp.exp(x - m)
        p = e / jnp.sum(e, axis=0, keepdims=True)
    else:
        p = jax.nn.sigmoid(x)

    if mask_needed:
        # Ragged tail: zero out pixels past the true pixel count.
        rt = x.shape[1]
        row_i = lax.broadcasted_iota(jnp.int32, (rt, LANE), 0)
        lane_i = lax.broadcasted_iota(jnp.int32, (rt, LANE), 1)
        gidx = (r * rt + row_i) * LANE + lane_i
        valid = (gidx < valid_pixels)[None]               # (1, rt, 128)
        p = jnp.where(valid, p, 0.0)
        t = jnp.where(valid, t, 0.0)

    def _rsum(a):                                         # (C, rt, 128) -> (C, 1)
        return jnp.sum(jnp.sum(a, axis=2), axis=1, keepdims=True)

    out_ref[:, 0:1] += _rsum(p * t)
    out_ref[:, 1:2] += _rsum(p * p)
    out_ref[:, 2:3] += _rsum(t * t)


def dice_loss(x, target, weight=None, sigmoid_normalization=True,
              epsilon=1e-6, tile_rows=256):
    """Faithful forward of _AbstractDiceLoss (standard DiceLoss `dice`).

    x      : (N, C, D, H, W) float logits
    target : (N, C, D, H, W) float targets (same shape as input)
    weight : optional (C,) per-channel weight buffer
    """
    assert x.shape == target.shape
    N, C = x.shape[0], x.shape[1]
    P = 1
    for s in x.shape[2:]:
        P *= int(s)

    xf = x.reshape(N, C, P)            # free reshape of contiguous NCDHW
    tf = target.reshape(N, C, P)

    R = pl.cdiv(P, LANE)
    pad = R * LANE - P
    if pad:
        # TODO(synk): fallback pad copy when the voxel count is not a multiple of
        # 128 lanes; padded elements are zeroed by the in-kernel mask below.
        xf = jnp.pad(xf, ((0, 0), (0, 0), (0, pad)))
        tf = jnp.pad(tf, ((0, 0), (0, 0), (0, pad)))
    x4 = xf.reshape(N, C, R, LANE)
    t4 = tf.reshape(N, C, R, LANE)

    # Row-tile: multiple of 8 sublanes, capped so two double-buffered input tiles
    # stay ~<= 8 MiB of VMEM (safe on v5e / v6e / v7x default scoped limits).
    bytes_per_row = C * LANE * 4
    vmem_rows = max(8, ((2 * 1024 * 1024) // bytes_per_row) // 8 * 8)
    rt = min(int(tile_rows), vmem_rows)
    if rt >= R:
        rt = R                         # full-extent block (always legal)
    else:
        rt = max(8, (rt // 8) * 8)
    num_rt = pl.cdiv(R, rt)
    mask_needed = bool(num_rt * rt * LANE > P)

    kernel = functools.partial(
        _dice_sums_kernel,
        softmax_norm=not sigmoid_normalization,
        valid_pixels=P,
        mask_needed=mask_needed,
    )

    sums = pl.pallas_call(
        kernel,
        out_shape=jax.ShapeDtypeStruct((N, C, 3), jnp.float32),
        grid_spec=pltpu.PrefetchScalarGridSpec(
            num_scalar_prefetch=0,
            grid=(N, num_rt),
            in_specs=[
                pl.BlockSpec((pl.Squeezed(), C, rt, LANE),
                             lambda n, r: (n, 0, r, 0)),
                pl.BlockSpec((pl.Squeezed(), C, rt, LANE),
                             lambda n, r: (n, 0, r, 0)),
            ],
            out_specs=pl.BlockSpec((pl.Squeezed(), C, 3),
                                   lambda n, r: (n, 0, 0)),
        ),
        compiler_params=pltpu.CompilerParams(
            dimension_semantics=("parallel", "arbitrary")),
    )(x4, t4)

    # O(C) finalize in plain JAX (negligible).
    intersect = jnp.sum(sums[:, :, 0], axis=0)                       # (C,)
    if weight is not None:
        intersect = jnp.asarray(weight, jnp.float32) * intersect
    denominator = jnp.sum(sums[:, :, 1], axis=0) + jnp.sum(sums[:, :, 2], axis=0)
    per_channel_dice = 2.0 * (intersect / jnp.maximum(denominator, epsilon))
    return 1.0 - jnp.mean(per_channel_dice)


def _reference_dice_loss(x, t, weight=None, sigmoid_normalization=True,
                         epsilon=1e-6):
    """Pure-JAX mirror of the PyTorch forward (for validation)."""
    if sigmoid_normalization:
        p = jax.nn.sigmoid(x)
    else:
        p = jax.nn.softmax(x, axis=1)
    C = x.shape[1]
    pf = jnp.moveaxis(p, 1, 0).reshape(C, -1)
    tf = jnp.moveaxis(t, 1, 0).reshape(C, -1).astype(jnp.float32)
    intersect = jnp.sum(pf * tf, axis=-1)
    if weight is not None:
        intersect = jnp.asarray(weight, jnp.float32) * intersect
    denominator = jnp.sum(pf * pf, axis=-1) + jnp.sum(tf * tf, axis=-1)
    dice = 2.0 * (intersect / jnp.maximum(denominator, epsilon))
    return 1.0 - jnp.mean(dice)


if __name__ == "__main__":
    # Small 3-D segmentation shapes: (N, C, D, H, W); target is one-hot, same
    # shape as the input (as required by compute_per_channel_dice).
    N, C, D, H, W = 2, 4, 8, 16, 16

    key = jax.random.PRNGKey(0)
    k1, k2 = jax.random.split(key)

    logits = jax.random.normal(k1, (N, C, D, H, W), dtype=jnp.float32)
    labels = jax.random.randint(k2, (N, D, H, W), 0, C, dtype=jnp.int32)
    target = jnp.transpose(jax.nn.one_hot(labels, C, dtype=jnp.float32),
                           (0, 4, 1, 2, 3))                 # (N, C, D, H, W)

    # deterministic per-channel weight buffer (shape (C,))
    weight = 0.5 + 0.25 * jnp.arange(C, dtype=jnp.float32)

    # 1) default path: sigmoid normalization + channel weights, multi-tile grid
    loss_sig = dice_loss(logits, target, weight=weight,
                         sigmoid_normalization=True, tile_rows=8)
    loss_sig = jax.block_until_ready(loss_sig)
    ref_sig = _reference_dice_loss(logits, target, weight=weight,
                                   sigmoid_normalization=True)
    assert jnp.allclose(loss_sig, ref_sig, rtol=1e-4, atol=1e-6), (loss_sig, ref_sig)

    # 2) softmax normalization, no weight, single-tile grid
    loss_sm = dice_loss(logits, target, weight=None,
                        sigmoid_normalization=False)
    loss_sm = jax.block_until_ready(loss_sm)
    ref_sm = _reference_dice_loss(logits, target, weight=None,
                                  sigmoid_normalization=False)
    assert jnp.allclose(loss_sm, ref_sm, rtol=1e-4, atol=1e-6), (loss_sm, ref_sm)

    print("KERNEL_OK")
</pallas_src>

<mosaic_0001>
module attributes {stable_mosaic.version = 11 : i64} {
  func.func @_dice_sums_kernel(%arg0: i32, %arg1: i32, %arg2: memref<1x4x8x128xf32, #tpu.memory_space<vmem>>, %arg3: memref<1x4x8x128xf32, #tpu.memory_space<vmem>>, %arg4: memref<1x4x3xf32, #tpu.memory_space<vmem>>) attributes {dimension_semantics = [#tpu.dimension_semantics<parallel>, #tpu.dimension_semantics<arbitrary>], iteration_bounds = array<i64: 2, 2>, scalar_prefetch = 0 : i64, scratch_operands = 0 : i64, tpu.core_type = #tpu.core_type<tc>, window_params = [{transform_indices = @transform_0, window_bounds = array<i64: 1, 4, 8, 128>}, {transform_indices = @transform_1, window_bounds = array<i64: 1, 4, 8, 128>}, {transform_indices = @transform_2, window_bounds = array<i64: 1, 4, 3>}]} {
    %c0_i32 = arith.constant 0 : i32
    %0 = arith.cmpi eq, %arg1, %c0_i32 : i32
    %1 = arith.extui %0 : i1 to i32
    %c0_i32_0 = arith.constant 0 : i32
    %2 = arith.cmpi ne, %1, %c0_i32_0 : i32
    scf.if %2 {
      %cst_30 = arith.constant 0.000000e+00 : f32
      %42 = vector.broadcast %cst_30 : f32 to vector<4x3xf32>
      %c0_31 = arith.constant 0 : index
      %c0_32 = arith.constant 0 : index
      %c0_33 = arith.constant 0 : index
      %43 = vector.load %arg4[%c0_31, %c0_32, %c0_33] : memref<1x4x3xf32, #tpu.memory_space<vmem>>, vector<1x4x3xf32>
      %44 = vector.shape_cast %43 : vector<1x4x3xf32> to vector<4x3xf32>
      %45 = vector.shape_cast %42 : vector<4x3xf32> to vector<1x4x3xf32>
      tpu.vector_store %arg4[%c0_31, %c0_32, %c0_33], %45 {strides = array<i32>} : memref<1x4x3xf32, #tpu.memory_space<vmem>>, vector<1x4x3xf32>,
    } else {
    }
    %c0 = arith.constant 0 : index
    %c0_1 = arith.constant 0 : index
    %c0_2 = arith.constant 0 : index
    %c0_3 = arith.constant 0 : index
    %3 = vector.load %arg2[%c0, %c0_1, %c0_2, %c0_3] : memref<1x4x8x128xf32, #tpu.memory_space<vmem>>, vector<1x4x8x128xf32>
    %4 = vector.shape_cast %3 : vector<1x4x8x128xf32> to vector<4x8x128xf32>
    %c0_4 = arith.constant 0 : index
    %c0_5 = arith.constant 0 : index
    %c0_6 = arith.constant 0 : index
    %c0_7 = arith.constant 0 : index
    %5 = vector.load %arg3[%c0_4, %c0_5, %c0_6, %c0_7] : memref<1x4x8x128xf32, #tpu.memory_space<vmem>>, vector<1x4x8x128xf32>
    %6 = vector.shape_cast %5 : vector<1x4x8x128xf32> to vector<4x8x128xf32>
    %7 = arith.negf %4 : vector<4x8x128xf32>
    %8 = math.exp %7 : vector<4x8x128xf32>
    %cst = arith.constant 1.000000e+00 : f32
    %9 = vector.broadcast %cst : f32 to vector<4x8x128xf32>
    %10 = arith.addf %9, %8 : vector<4x8x128xf32>
    %11 = arith.divf %9, %10 : vector<4x8x128xf32>
    %c0_8 = arith.constant 0 : index
    %c0_9 = arith.constant 0 : index
    %c0_10 = arith.constant 0 : index
    %12 = vector.load %arg4[%c0_8, %c0_9, %c0_10] : memref<1x4x3xf32, #tpu.memory_space<vmem>>, vector<1x4x1xf32>
    %13 = vector.shape_cast %12 : vector<1x4x1xf32> to vector<4x1xf32>
    %14 = arith.mulf %11, %6 : vector<4x8x128xf32>
    %cst_11 = arith.constant dense<0.000000e+00> : vector<4x8xf32>
    %15 = vector.multi_reduction <add>, %14, %cst_11 [2] : vector<4x8x128xf32> to vector<4x8xf32>
    %cst_12 = arith.constant dense<0.000000e+00> : vector<4xf32>
    %16 = vector.multi_reduction <add>, %15, %cst_12 [1] : vector<4x8xf32> to vector<4xf32>
    %17 = vector.shape_cast %16 : vector<4xf32> to vector<4x1xf32>
    %18 = arith.addf %13, %17 : vector<4x1xf32>
    %c0_13 = arith.constant 0 : index
    %c0_14 = arith.constant 0 : index
    %c0_15 = arith.constant 0 : index
    %19 = vector.load %arg4[%c0_13, %c0_14, %c0_15] : memref<1x4x3xf32, #tpu.memory_space<vmem>>, vector<1x4x1xf32>
    %20 = vector.shape_cast %19 : vector<1x4x1xf32> to vector<4x1xf32>
    %21 = vector.shape_cast %18 : vector<4x1xf32> to vector<1x4x1xf32>
    tpu.vector_store %arg4[%c0_13, %c0_14, %c0_15], %21 {strides = array<i32>} : memref<1x4x3xf32, #tpu.memory_space<vmem>>, vector<1x4x1xf32>,
    %c0_16 = arith.constant 0 : index
    %c0_17 = arith.constant 0 : index
    %c1 = arith.constant 1 : index
    %22 = vector.load %arg4[%c0_16, %c0_17, %c1] : memref<1x4x3xf32, #tpu.memory_space<vmem>>, vector<1x4x1xf32>
    %23 = vector.shape_cast %22 : vector<1x4x1xf32> to vector<4x1xf32>
    %24 = arith.mulf %11, %11 : vector<4x8x128xf32>
    %cst_18 = arith.constant dense<0.000000e+00> : vector<4x8xf32>
    %25 = vector.multi_reduction <add>, %24, %cst_18 [2] : vector<4x8x128xf32> to vector<4x8xf32>
    %cst_19 = arith.constant dense<0.000000e+00> : vector<4xf32>
    %26 = vector.multi_reduction <add>, %25, %cst_19 [1] : vector<4x8xf32> to vector<4xf32>
    %27 = vector.shape_cast %26 : vector<4xf32> to vector<4x1xf32>
    %28 = arith.addf %23, %27 : vector<4x1xf32>
    %c0_20 = arith.constant 0 : index
    %c0_21 = arith.constant 0 : index
    %c1_22 = arith.constant 1 : index
    %29 = vector.load %arg4[%c0_20, %c0_21, %c1_22] : memref<1x4x3xf32, #tpu.memory_space<vmem>>, vector<1x4x1xf32>
    %30 = vector.shape_cast %29 : vector<1x4x1xf32> to vector<4x1xf32>
    %31 = vector.shape_cast %28 : vector<4x1xf32> to vector<1x4x1xf32>
    tpu.vector_store %arg4[%c0_20, %c0_21, %c1_22], %31 {strides = array<i32>} : memref<1x4x3xf32, #tpu.memory_space<vmem>>, vector<1x4x1xf32>,
    %c0_23 = arith.constant 0 : index
    %c0_24 = arith.constant 0 : index
    %c2 = arith.constant 2 : index
    %32 = vector.load %arg4[%c0_23, %c0_24, %c2] : memref<1x4x3xf32, #tpu.memory_space<vmem>>, vector<1x4x1xf32>
    %33 = vector.shape_cast %32 : vector<1x4x1xf32> to vector<4x1xf32>
    %34 = arith.mulf %6, %6 : vector<4x8x128xf32>
    %cst_25 = arith.constant dense<0.000000e+00> : vector<4x8xf32>
    %35 = vector.multi_reduction <add>, %34, %cst_25 [2] : vector<4x8x128xf32> to vector<4x8xf32>
    %cst_26 = arith.constant dense<0.000000e+00> : vector<4xf32>
    %36 = vector.multi_reduction <add>, %35, %cst_26 [1] : vector<4x8xf32> to vector<4xf32>
    %37 = vector.shape_cast %36 : vector<4xf32> to vector<4x1xf32>
    %38 = arith.addf %33, %37 : vector<4x1xf32>
    %c0_27 = arith.constant 0 : index
    %c0_28 = arith.constant 0 : index
    %c2_29 = arith.constant 2 : index
    %39 = vector.load %arg4[%c0_27, %c0_28, %c2_29] : memref<1x4x3xf32, #tpu.memory_space<vmem>>, vector<1x4x1xf32>
    %40 = vector.shape_cast %39 : vector<1x4x1xf32> to vector<4x1xf32>
    %41 = vector.shape_cast %38 : vector<4x1xf32> to vector<1x4x1xf32>
    tpu.vector_store %arg4[%c0_27, %c0_28, %c2_29], %41 {strides = array<i32>} : memref<1x4x3xf32, #tpu.memory_space<vmem>>, vector<1x4x1xf32>,
    return
  }
  func.func @transform_0(%arg0: i32, %arg1: i32) -> (i32, i32, i32, i32) {
    %c0_i32 = arith.constant 0 : i32
    %c0_i32_0 = arith.constant 0 : i32
    %c0_i32_1 = arith.constant 0 : i32
    return %arg0, %c0_i32, %arg1, %c0_i32_0 : i32, i32, i32, i32
  }
  func.func @transform_1(%arg0: i32, %arg1: i32) -> (i32, i32, i32, i32) {
    %c0_i32 = arith.constant 0 : i32
    %c0_i32_0 = arith.constant 0 : i32
    %c0_i32_1 = arith.constant 0 : i32
    return %arg0, %c0_i32, %arg1, %c0_i32_0 : i32, i32, i32, i32
  }
  func.func @transform_2(%arg0: i32, %arg1: i32) -> (i32, i32, i32) {
    %c0_i32 = arith.constant 0 : i32
    %c0_i32_0 = arith.constant 0 : i32
    %c0_i32_1 = arith.constant 0 : i32
    return %arg0, %c0_i32, %c0_i32_0 : i32, i32, i32
  }
}

</mosaic_0001>

<llo_original>
// kernel: tpu_custom_call.1
$region0: #{tpu_custom_call.1}
  #allocation0 [shape = 'u32[]', space=smem, size = 0x4, offset = 0x4, fixed_abs, tag = 'smem constant byte address 0x4 - core index']
  #allocation1 [shape = 'u32[144,128]{1,0:T(1,128)}', space=vmem, size = 0x12000, scoped, tag = 'internal scratch']
  %s0 = inlined_call_operand.hbm [shape: f32[2,4,16,128], index: 0, kind: input, shape index: {}]
  %s1 = inlined_call_operand.hbm [shape: f32[2,4,16,128], index: 1, kind: input, shape index: {}]
  %s2 = inlined_call_operand.vmem [shape: f32[2,4,3], index: 2, kind: output, shape index: {}]
  %s3 = sld [smem:[#allocation0]]
  $region53: #{tpu_custom_call.1} parent=0
    _
  %s5 = ssub.s32 1, %s3
  %s6 = scalar_select 0, %s5, %s3
  $region1: #{tpu_custom_call.1} parent=0
    #allocation2 [shape = 'u8[32768]{0}', space=vmem, size = 0x8000, scoped, tag = 'input window, operand 0']
    #allocation3 [shape = 's32[2]{0}', space=sflag, size = 0x8, scoped, tag = 'scoped memory for tpu_custom_call.1']
    #allocation4 [shape = 'u8[32768]{0}', space=vmem, size = 0x8000, scoped, tag = 'input window, operand 1']
    #allocation5 [shape = 's32[2]{0}', space=sflag, size = 0x8, scoped, tag = 'scoped memory for tpu_custom_call.1']
    %7 = vsyncpa [#allocation3], 0
    %s8 = scalar_lea.sflag [#allocation3], 1
    %9 = vsyncpa %s8, 0
    %10 = vsyncpa [#allocation5], 0
    %s11 = scalar_lea.sflag [#allocation5], 1
    %12 = vsyncpa %s11, 0
    loop: start=0, step=1, limit=6
    $region2: #{tpu_custom_call.1} parent=1 // loop_pre_header
      _
    $region3: #{tpu_custom_call.1} parent=1 // loop_header
      %s14 = sphi 0, %s18
      %p15 = scmp.ge.s32.totalorder %s14, 6
      %s21 = sphi 0, %s33
      %s22 = sphi 0, %s29
      %s23 = sphi 0, %s21
      %s24 = sphi 0, %s22
      %s25 = sphi 0, %s23
      %s26 = sphi 0, %s24
      %s38 = sphi 0, %s40
      %s41 = sphi 0, %s38
      %s42 = sphi 0, %s41
      %s58 = sphi 0, %s42
      %s66 = sphi 0, %s68
      %s69 = sphi 0, %s66
      %s70 = sphi 0, %s69
      %s86 = sphi 0, %s70
      %s92 = sphi 0, %s94
      %s95 = sphi 0, %s92
      %s96 = sphi 0, %s95
      %s112 = sphi 0, %s96
    $region4: #{tpu_custom_call.1} parent=1 // loop_header_branch
      %17 = sbr.rel (%p15) target = $region8
    $region5: #{tpu_custom_call.1} parent=1 // loop_body
      %s19 = ssub.s32 %s14, 1
      %s20 = ssub.s32 %s14, 2
      %s27 = sadd.s32 1, %s22
      %p28 = scmp.ge.s32.totalorder %s27, 2
      %s29 = scalar_select %p28, 0, %s27
      %s30 = sadd.s32 1, %s21
      %s31 = scalar_select %p28, %s30, %s21
      %p32 = scmp.ge.s32.totalorder %s31, 2
      %s33 = scalar_select %p32, 0, %s31
      %s34 = ssub.s32 %s21, %s33
      %s35 = ssub.s32 %s22, %s29
      %s36 = sor.u32 %s34, %s35
      %p37 = scmp.eq.s32.totalorder %s36, 0
      %s39 = sadd.s32 %s38, 1
      %s40 = scalar_select %p37, %s38, %s39
      %p43 = pneg %p37
      %p44 = scmp.eq.s32.totalorder %s14, 3
      %p45 = por %p43, %p44
      %p46 = scmp.ne.s32.totalorder %s38, %s41
      %p47 = scmp.eq.s32.totalorder %s14, 0
      %p48 = por %p46, %p47
      %p49 = scmp.ne.s32.totalorder %s38, %s41
      %p50 = scmp.eq.s32.totalorder %s19, 3
      %p51 = por %p49, %p50
      %p52 = scmp.ne.s32.totalorder %s41, %s42
      %p53 = scmp.eq.s32.totalorder %s19, 0
      %p54 = por %p52, %p53
      %p55 = scmp.ne.s32.totalorder %s41, %s42
      %p56 = scmp.eq.s32.totalorder %s20, 3
      %p57 = por %p55, %p56
      %p59 = scmp.ne.s32.totalorder %s42, %s58
      %p60 = scmp.eq.s32.totalorder %s20, 0
      %p61 = por %p59, %p60
      %s62 = ssub.s32 %s21, %s33
      %s63 = ssub.s32 %s22, %s29
      %s64 = sor.u32 %s62, %s63
      %p65 = scmp.eq.s32.totalorder %s64, 0
      %s67 = sadd.s32 %s66, 1
      %s68 = scalar_select %p65, %s66, %s67
      %p71 = pneg %p65
      %p72 = scmp.eq.s32.totalorder %s14, 3
      %p73 = por %p71, %p72
      %p74 = scmp.ne.s32.totalorder %s66, %s69
      %p75 = scmp.eq.s32.totalorder %s14, 0
      %p76 = por %p74, %p75
      %p77 = scmp.ne.s32.totalorder %s66, %s69
      %p78 = scmp.eq.s32.totalorder %s19, 3
      %p79 = por %p77, %p78
      %p80 = scmp.ne.s32.totalorder %s69, %s70
      %p81 = scmp.eq.s32.totalorder %s19, 0
      %p82 = por %p80, %p81
      %p83 = scmp.ne.s32.totalorder %s69, %s70
      %p84 = scmp.eq.s32.totalorder %s20, 3
      %p85 = por %p83, %p84
      %p87 = scmp.ne.s32.totalorder %s70, %s86
      %p88 = scmp.eq.s32.totalorder %s20, 0
      %p89 = por %p87, %p88
      %s90 = ssub.s32 %s21, %s33
      %p91 = scmp.eq.s32.totalorder %s90, 0
      %s93 = sadd.s32 %s92, 1
      %s94 = scalar_select %p91, %s92, %s93
      %p97 = pneg %p91
      %p98 = scmp.eq.s32.totalorder %s14, 3
      %p99 = por %p97, %p98
      %p100 = scmp.ne.s32.totalorder %s92, %s95
      %p101 = scmp.eq.s32.totalorder %s14, 0
      %p102 = por %p100, %p101
      %p103 = scmp.ne.s32.totalorder %s92, %s95
      %p104 = scmp.eq.s32.totalorder %s19, 3
      %p105 = por %p103, %p104
      %p106 = scmp.ne.s32.totalorder %s95, %s96
      %p107 = scmp.eq.s32.totalorder %s19, 0
      %p108 = por %p106, %p107
      %p109 = scmp.ne.s32.totalorder %s95, %s96
      %p110 = scmp.eq.s32.totalorder %s20, 3
      %p111 = por %p109, %p110
      %p113 = scmp.ne.s32.totalorder %s96, %s112
      %p114 = scmp.eq.s32.totalorder %s20, 0
      %p115 = por %p113, %p114
      %p116 = scmp.le.s32.totalorder 1, %s14
      %p117 = scmp.lt.s32.totalorder %s14, 5
      %p118 = pnand %p116, %p117
      %p119 = pneg %p118
      // Predicated region
      $region9: #{tpu_custom_call.1} parent=5 // pred_check
        _
      $region10: #{tpu_custom_call.1} parent=5 // pred_check_branch
        %121 = sbr.rel (%p118) target = $region12
      $region11: #{tpu_custom_call.1} parent=5 // pred_region
        %s122 = ssub.s32 %s14, 1
      $region12: #{tpu_custom_call.1} parent=5 // pred_fallthru
        _
      %p123 = scmp.lt.s32.totalorder %s14, 4
      // Predicated region
      $region13: #{tpu_custom_call.1} parent=5 // pred_check
        %p124 = pneg %p123
      $region14: #{tpu_custom_call.1} parent=5 // pred_check_branch
        %126 = sbr.rel (%p124) target = $region16
      $region15: #{tpu_custom_call.1} parent=5 // pred_region
        // Predicated region
        $region17: #{tpu_custom_call.1} parent=15 // pred_check
          %p127 = pneg %p48
        $region18: #{tpu_custom_call.1} parent=15 // pred_check_branch
          %129 = sbr.rel (%p127) target = $region20
        $region19: #{tpu_custom_call.1} parent=15 // pred_region
          %s130 = sand.u32 %s38, 1
          %s131 = scalar_lea.sflag [#allocation3], %s130
          %s132 = sand.u32 %s38, 1
          %s133 = smul.addr %s132, 32
          %s134 = scalar_lea.vmem [#allocation2], %s133
          %s136 = ssub.s32 512, 512
          %137 = vsyncadd %s131, %s136
          %s138 = smul.addr %s21, 8
          %s139 = sadd.s32 %s22, %s138
          %s140 = smul.addr %s139, 128
          %s141 = scalar_lea.hbm %s0, %s140
          %s142 = sshll.u32 %s134, 4
          %s143 = int_to_ptr.vmem [resolvable:$true] %s142
          %148 = dma.hbm_to_vmem [thread:$0]  %s141, 512, %s143, %s131, 256, 128, 8
        $region20: #{tpu_custom_call.1} parent=15 // pred_fallthru
          _
        // Predicated region
        $region21: #{tpu_custom_call.1} parent=15 // pred_check
          %p149 = pneg %p76
        $region22: #{tpu_custom_call.1} parent=15 // pred_check_branch
          %151 = sbr.rel (%p149) target = $region24
        $region23: #{tpu_custom_call.1} parent=15 // pred_region
          %s152 = sand.u32 %s66, 1
          %s153 = scalar_lea.sflag [#allocation5], %s152
          %s154 = sand.u32 %s66, 1
          %s155 = smul.addr %s154, 32
          %s156 = scalar_lea.vmem [#allocation4], %s155
          %s158 = ssub.s32 512, 512
          %159 = vsyncadd %s153, %s158
          %s160 = smul.addr %s21, 8
          %s161 = sadd.s32 %s22, %s160
          %s162 = smul.addr %s161, 128
          %s163 = scalar_lea.hbm %s1, %s162
          %s164 = sshll.u32 %s156, 4
          %s165 = int_to_ptr.vmem [resolvable:$true] %s164
          %170 = dma.hbm_to_vmem [thread:$0]  %s163, 512, %s165, %s153, 256, 128, 8
        $region24: #{tpu_custom_call.1} parent=15 // pred_fallthru
          _
      $region16: #{tpu_custom_call.1} parent=5 // pred_fallthru
        _
      %p171 = scmp.le.s32.totalorder 1, %s14
      %p172 = scmp.lt.s32.totalorder %s14, 5
      %p173 = pnand %p171, %p172
      %p174 = pneg %p173
      // Predicated region
      $region25: #{tpu_custom_call.1} parent=5 // pred_check
        _
      $region26: #{tpu_custom_call.1} parent=5 // pred_check_branch
        %176 = sbr.rel (%p173) target = $region28
      $region27: #{tpu_custom_call.1} parent=5 // pred_region
        %s177 = ssub.s32 %s14, 1
        %s178 = sand.u32 %s41, 1
        %s179 = scalar_lea.sflag [#allocation3], %s178
        %s180 = sand.u32 %s41, 1
        %s181 = smul.addr %s180, 32
        %s182 = scalar_lea.vmem [#allocation2], %s181
        // Predicated region
        $region29: #{tpu_custom_call.1} parent=27 // pred_check
          %p183 = pneg %p54
        $region30: #{tpu_custom_call.1} parent=27 // pred_check_branch
          %185 = sbr.rel (%p183) target = $region32
        $region31: #{tpu_custom_call.1} parent=27 // pred_region
          %186 = dma.done %s179, 512
        $region32: #{tpu_custom_call.1} parent=27 // pred_fallthru
          _
        %s187 = sand.u32 %s69, 1
        %s188 = scalar_lea.sflag [#allocation5], %s187
        %s189 = sand.u32 %s69, 1
        %s190 = smul.addr %s189, 32
        %s191 = scalar_lea.vmem [#allocation4], %s190
        // Predicated region
        $region33: #{tpu_custom_call.1} parent=27 // pred_check
          %p192 = pneg %p82
        $region34: #{tpu_custom_call.1} parent=27 // pred_check_branch
          %194 = sbr.rel (%p192) target = $region36
        $region35: #{tpu_custom_call.1} parent=27 // pred_region
          %195 = dma.done %s188, 512
        $region36: #{tpu_custom_call.1} parent=27 // pred_fallthru
          _
        %s196 = sand.u32 %s41, 1
        %s197 = scalar_lea.sflag [#allocation3], %s196
        %s198 = sand.u32 %s41, 1
        %s199 = smul.addr %s198, 32
        %s200 = scalar_lea.vmem [#allocation2], %s199
        %p201 = pneg %p54
        %p202 = pneg %p51
        %s203 = sand.u32 %s69, 1
        %s204 = scalar_lea.sflag [#allocation5], %s203
        %s205 = sand.u32 %s69, 1
        %s206 = smul.addr %s205, 32
        %s207 = scalar_lea.vmem [#allocation4], %s206
        %p208 = pneg %p82
        %p209 = pneg %p79
        %p210 = pneg %p108
        %p211 = pneg %p105
        %p212 = scmp.lt.s32.totalorder %s23, 1
        %s213 = scalar_select %p212, %s23, 1
        %s214 = smul.addr %s213, 4
        %s215 = scalar_lea.vmem %s2, %s214
        %p216 = scmp.lt.s32.totalorder %s23, 1
        %s217 = scalar_select %p216, %s23, 1
        %s218 = smul.addr %s217, 4
        %s219 = scalar_lea.vmem %s2, %s218
        %p220 = scmp.eq.s32.totalorder %s24, 0
        // Predicated region
        $region37: #{tpu_custom_call.1} parent=27 // pred_check
          %p221 = pneg %p220
        $region38: #{tpu_custom_call.1} parent=27 // pred_check_branch
          %223 = sbr.rel (%p221) target = $region40
        $region39: #{tpu_custom_call.1} parent=27 // pred_region
          %vm224 = vcmask 19456
          %225 = vst.msk [vmem:[%s219] sm:$0xf] %vm224, 0.0
        $region40: #{tpu_custom_call.1} parent=27 // pred_fallthru
          _
        %v226 = vld [vmem:[%s182] sm:$0xff]
        %v227 = vld [vmem:[%s182 + $0x8] sm:$0xff]
        %v228 = vld [vmem:[%s182 + $0x10] sm:$0xff]
        %v229 = vld [vmem:[%s182 + $0x18] sm:$0xff]
        %v230 = vld [vmem:[%s191] sm:$0xff]
        %v231 = vld [vmem:[%s191 + $0x8] sm:$0xff]
        %v232 = vld [vmem:[%s191 + $0x10] sm:$0xff]
        %v233 = vld [vmem:[%s191 + $0x18] sm:$0xff]
        %v234 = vxor.u32 %v226, 2147483648
        %v235 = vxor.u32 %v227, 2147483648
        %v236 = vxor.u32 %v228, 2147483648
        %v237 = vxor.u32 %v229, 2147483648
        %v238 = vmul.f32 %v234, 1.442695
        %v239 = vpow.pop %v238
        %v240 = vmul.f32 %v235, 1.442695
        %v241 = vpow.pop %v240
        %v242 = vmul.f32 %v236, 1.442695
        %v243 = vpow.pop %v242
        %v244 = vmul.f32 %v237, 1.442695
        %v245 = vpow.pop %v244
        %v246 = vadd.f32 %v239, 1.0
        %v247 = vadd.f32 %v241, 1.0
        %v248 = vadd.f32 %v243, 1.0
        %v249 = vadd.f32 %v245, 1.0
        %v250 = vrcp.pop %v246
        %v251 = vmul.f32 1.0, %v250
        %v252 = vrcp.pop %v247
        %v253 = vmul.f32 1.0, %v252
        %v254 = vrcp.pop %v248
        %v255 = vmul.f32 1.0, %v254
        %v256 = vrcp.pop %v249
        %v257 = vmul.f32 1.0, %v256
        %v258 = vld [vmem:[%s219] sm:$0xf]
        %v259 = vmul.f32 %v251, %v230
        %v260 = vmul.f32 %v253, %v231
        %v261 = vmul.f32 %v255, %v232
        %v262 = vmul.f32 %v257, %v233
        %263 = vadd.xlane.f32.xlu0 %v259
        %v264 = vpop.xlane.xlu0 %263
        %265 = vadd.xlane.f32.xlu0 %v260
        %v266 = vpop.xlane.xlu0 %265
        %267 = vadd.xlane.f32.xlu0 %v261
        %v268 = vpop.xlane.xlu0 %267
        %269 = vadd.xlane.f32.xlu0 %v262
        %v270 = vpop.xlane.xlu0 %269
        %v275 = vlaneseq
        %v276 = vand.u32 %v275, 127
        %v277 = vlaneseq
        %v278 = vshrl.u32 %v277, 7
        %v279 = vsub.s32 %v276, %v278
        %v280 = vrot.slane %v264, %v279
        %v281 = vlaneseq
        %v282 = vshrl.u32 %v281, 7
        %v283 = vsub.s32 %v276, %v282
        %v284 = vrot.slane %v266, %v283
        %v285 = vlaneseq
        %v286 = vshrl.u32 %v285, 7
        %v287 = vsub.s32 %v276, %v286
        %v288 = vrot.slane %v268, %v287
        %v289 = vlaneseq
        %v290 = vshrl.u32 %v289, 7
        %v291 = vsub.s32 %v276, %v290
        %v292 = vrot.slane %v270, %v291
        %vm293 = vcmask 1041409
        %v294 = vsel %vm293, %v284, %v280
        %vm295 = vcmask 1042434
        %v296 = vsel %vm295, %v288, %v294
        %vm297 = vcmask 1043459
        %v298 = vsel %vm297, %v292, %v296
        %vm300 = vcmask 60416
        %v301 = vsel %vm300, %v298, 0.0
        %302 = vadd.xlane.f32.xlu0 %v301
        %v303 = vpop.xlane.xlu0 %302
        %v304 = vadd.f32 %v258, %v303
        %vm305 = vcmask 3072
        %306 = vst.msk [vmem:[%s219] sm:$0xf] %vm305, %v304
        %v307 = vld [vmem:[%s219] sm:$0xf]
        %v308 = vmul.f32 %v251, %v251
        %v309 = vmul.f32 %v253, %v253
        %v310 = vmul.f32 %v255, %v255
        %v311 = vmul.f32 %v257, %v257
        %312 = vadd.xlane.f32.xlu0 %v308
        %v313 = vpop.xlane.xlu0 %312
        %314 = vadd.xlane.f32.xlu0 %v309
        %v315 = vpop.xlane.xlu0 %314
        %316 = vadd.xlane.f32.xlu0 %v310
        %v317 = vpop.xlane.xlu0 %316
        %318 = vadd.xlane.f32.xlu0 %v311
        %v319 = vpop.xlane.xlu0 %318
        %v324 = vlaneseq
        %v325 = vshrl.u32 %v324, 7
        %v326 = vsub.s32 %v276, %v325
        %v327 = vrot.slane %v313, %v326
        %v328 = vlaneseq
        %v329 = vshrl.u32 %v328, 7
        %v330 = vsub.s32 %v276, %v329
        %v331 = vrot.slane %v315, %v330
        %v332 = vlaneseq
        %v333 = vshrl.u32 %v332, 7
        %v334 = vsub.s32 %v276, %v333
        %v335 = vrot.slane %v317, %v334
        %v336 = vlaneseq
        %v337 = vshrl.u32 %v336, 7
        %v338 = vsub.s32 %v276, %v337
        %v339 = vrot.slane %v319, %v338
        %v340 = vsel %vm293, %v331, %v327
        %v341 = vsel %vm295, %v335, %v340
        %v342 = vsel %vm297, %v339, %v341
        %v344 = vsel %vm300, %v342, 0.0
        %345 = vadd.xlane.f32.xlu0 %v344
        %v346 = vpop.xlane.xlu0 %345
        %v347 = vadd.f32 %v307, %v346
        %vm348 = vcmask 11272
        %349 = vst.msk [vmem:[%s219] sm:$0xf] %vm348, %v347
        %v350 = vld [vmem:[%s219] sm:$0xf]
        %v351 = vmul.f32 %v230, %v230
        %v352 = vmul.f32 %v231, %v231
        %v353 = vmul.f32 %v232, %v232
        %v354 = vmul.f32 %v233, %v233
        %355 = vadd.xlane.f32.xlu0 %v351
        %v356 = vpop.xlane.xlu0 %355
        %357 = vadd.xlane.f32.xlu0 %v352
        %v358 = vpop.xlane.xlu0 %357
        %359 = vadd.xlane.f32.xlu0 %v353
        %v360 = vpop.xlane.xlu0 %359
        %361 = vadd.xlane.f32.xlu0 %v354
        %v362 = vpop.xlane.xlu0 %361
        %v367 = vlaneseq
        %v368 = vshrl.u32 %v367, 7
        %v369 = vsub.s32 %v276, %v368
        %v370 = vrot.slane %v356, %v369
        %v371 = vlaneseq
        %v372 = vshrl.u32 %v371, 7
        %v373 = vsub.s32 %v276, %v372
        %v374 = vrot.slane %v358, %v373
        %v375 = vlaneseq
        %v376 = vshrl.u32 %v375, 7
        %v377 = vsub.s32 %v276, %v376
        %v378 = vrot.slane %v360, %v377
        %v379 = vlaneseq
        %v380 = vshrl.u32 %v379, 7
        %v381 = vsub.s32 %v276, %v380
        %v382 = vrot.slane %v362, %v381
        %v383 = vsel %vm293, %v374, %v370
        %v384 = vsel %vm295, %v378, %v383
        %v385 = vsel %vm297, %v382, %v384
        %v387 = vsel %vm300, %v385, 0.0
        %388 = vadd.xlane.f32.xlu0 %v387
        %v389 = vpop.xlane.xlu0 %388
        %v390 = vadd.f32 %v350, %v389
        %vm391 = vcmask 19472
        %392 = vst.msk [vmem:[%s219] sm:$0xf] %vm391, %v390
        %p393 = scmp.lt.s32.totalorder %s23, 1
        %s394 = scalar_select %p393, %s23, 1
        %s395 = smul.addr %s394, 4
        %s396 = scalar_lea.vmem %s2, %s395
        // Predicated region
        $region41: #{tpu_custom_call.1} parent=27 // pred_check
          %p397 = pneg %p105
        $region42: #{tpu_custom_call.1} parent=27 // pred_check_branch
          %399 = sbr.rel (%p397) target = $region44
        $region43: #{tpu_custom_call.1} parent=27 // pred_region
          _
        $region44: #{tpu_custom_call.1} parent=27 // pred_fallthru
          _
      $region28: #{tpu_custom_call.1} parent=5 // pred_fallthru
        _
      %p400 = scmp.le.s32.totalorder 2, %s14
      // Predicated region
      $region45: #{tpu_custom_call.1} parent=5 // pred_check
        %p401 = pneg %p400
      $region46: #{tpu_custom_call.1} parent=5 // pred_check_branch
        %403 = sbr.rel (%p401) target = $region48
      $region47: #{tpu_custom_call.1} parent=5 // pred_region
        %s404 = ssub.s32 %s14, 2
        // Predicated region
        $region49: #{tpu_custom_call.1} parent=47 // pred_check
          %p405 = pneg %p111
        $region50: #{tpu_custom_call.1} parent=47 // pred_check_branch
          %407 = sbr.rel (%p405) target = $region52
        $region51: #{tpu_custom_call.1} parent=47 // pred_region
          %p408 = scmp.lt.s32.totalorder %s25, 1
          %s409 = scalar_select %p408, %s25, 1
          %s410 = smul.addr %s409, 4
          %s411 = scalar_lea.vmem %s2, %s410
        $region52: #{tpu_custom_call.1} parent=47 // pred_fallthru
          _
      $region48: #{tpu_custom_call.1} parent=5 // pred_fallthru
        _
    $region6: #{tpu_custom_call.1} parent=1 // loop_footer
      %s18 = sadd.s32 1, %s14
    $region7: #{tpu_custom_call.1} parent=1 // loop_footer_branch
      %13 = sbr.rel target = $region3
    $region8: #{tpu_custom_call.1} parent=1 // loop_exit
      _
    %412 = vsyncpa [#allocation3], 1
    %s413 = scalar_lea.sflag [#allocation3], 1
    %414 = vsyncpa %s413, 1
    %415 = vsyncpa [#allocation5], 1
    %s416 = scalar_lea.sflag [#allocation5], 1
    %417 = vsyncpa %s416, 1

</llo_original>
